<compile_context>
chip_gen: v6e
topology: v6e:2x2x1
jax: 0.10.0
libtpu: 0.0.40
codegen_flags: <defaults>
</compile_context>

<pallas_src>
import functools
import math

import jax
import jax.numpy as jnp
from jax.experimental import pallas as pl
from jax.experimental.pallas import tpu as pltpu


VMEM_LIMIT = 32 * 1024 * 1024  # safe on v5e/v6e/v7x; tiles below stay well under it


def _pick_tile(dim, prefs):
    """Largest preferred tile that evenly divides `dim`; else fall back to full dim."""
    for p in prefs:
        if dim >= p and dim % p == 0:
            return p
    return dim


# --------------------------------------------------------------------------- #
# Tiled linear (optional GELU), bias added on last K step only
# --------------------------------------------------------------------------- #
def _linear_kernel(x_ref, w_ref, b_ref, o_ref, acc_ref, *, activation):
    @pl.when(pl.program_id(2) == 0)
    def _():
        acc_ref[...] = jnp.zeros_like(acc_ref)

    acc_ref[...] += jnp.dot(x_ref[...].astype(jnp.bfloat16), w_ref[...],
                            preferred_element_type=jnp.float32)

    @pl.when(pl.program_id(2) == pl.num_programs(2) - 1)
    def _():
        acc = acc_ref[...] + b_ref[...].astype(jnp.float32)
        if activation == "gelu":
            # TODO(synk): HF Roberta uses exact erf-GELU; tanh approximation used here.
            c = math.sqrt(2.0 / math.pi)
            acc = 0.5 * acc * (1.0 + jnp.tanh(c * (acc + 0.044715 * acc * acc * acc)))
        elif activation == "tanh":
            acc = jnp.tanh(acc)
        o_ref[...] = acc.astype(o_ref.dtype)


def linear(x, w, b, activation="none"):
    M, K = x.shape
    _, N = w.shape
    tm = _pick_tile(M, (256, 128, 64, 32, 16, 8))
    tn = _pick_tile(N, (512, 384, 256, 128))
    tk = _pick_tile(K, (512, 256, 128))
    return pl.pallas_call(
        functools.partial(_linear_kernel, activation=activation),
        out_shape=jax.ShapeDtypeStruct((M, N), jnp.float32),
        grid=(M // tm, N // tn, K // tk),
        in_specs=[
            pl.BlockSpec((tm, tk), lambda i, j, k: (i, k)),
            pl.BlockSpec((tk, tn), lambda i, j, k: (k, j)),
            pl.BlockSpec((1, tn), lambda i, j, k: (0, j)),
        ],
        out_specs=pl.BlockSpec((tm, tn), lambda i, j, k: (i, j)),
        scratch_shapes=[pltpu.VMEM((tm, tn), jnp.float32)],
        compiler_params=pltpu.CompilerParams(
            dimension_semantics=("parallel", "parallel", "arbitrary"),
            vmem_limit_bytes=VMEM_LIMIT),
    )(x, w, b.reshape(1, N))


# --------------------------------------------------------------------------- #
# Tiled linear with fused residual-add + LayerNorm epilogue (full N per tile)
# --------------------------------------------------------------------------- #
def _linear_add_ln_kernel(x_ref, w_ref, b_ref, r_ref, g_ref, bt_ref, o_ref, acc_ref, *, eps):
    @pl.when(pl.program_id(1) == 0)
    def _():
        acc_ref[...] = jnp.zeros_like(acc_ref)

    acc_ref[...] += jnp.dot(x_ref[...].astype(jnp.bfloat16), w_ref[...],
                            preferred_element_type=jnp.float32)

    @pl.when(pl.program_id(1) == pl.num_programs(1) - 1)
    def _():
        y = acc_ref[...] + b_ref[...].astype(jnp.float32) + r_ref[...].astype(jnp.float32)
        mean = jnp.mean(y, axis=-1, keepdims=True)
        var = jnp.mean(jnp.square(y - mean), axis=-1, keepdims=True)
        yn = (y - mean) * jax.lax.rsqrt(var + eps)
        o_ref[...] = (yn * g_ref[...].astype(jnp.float32)
                      + bt_ref[...].astype(jnp.float32)).astype(o_ref.dtype)


def linear_add_layernorm(x, w, b, residual, gamma, beta, eps=1e-5):
    M, K = x.shape
    _, N = w.shape
    tm = _pick_tile(M, (256, 128, 64, 32, 16, 8))
    tk = _pick_tile(K, (512, 256, 128))
    return pl.pallas_call(
        functools.partial(_linear_add_ln_kernel, eps=eps),
        out_shape=jax.ShapeDtypeStruct((M, N), jnp.float32),
        grid=(M // tm, K // tk),
        in_specs=[
            pl.BlockSpec((tm, tk), lambda i, k: (i, k)),
            pl.BlockSpec((tk, N), lambda i, k: (k, 0)),
            pl.BlockSpec((1, N), lambda i, k: (0, 0)),
            pl.BlockSpec((tm, N), lambda i, k: (i, 0)),
            pl.BlockSpec((1, N), lambda i, k: (0, 0)),
            pl.BlockSpec((1, N), lambda i, k: (0, 0)),
        ],
        out_specs=pl.BlockSpec((tm, N), lambda i, k: (i, 0)),
        scratch_shapes=[pltpu.VMEM((tm, N), jnp.float32)],
        compiler_params=pltpu.CompilerParams(
            dimension_semantics=("parallel", "arbitrary"),
            vmem_limit_bytes=VMEM_LIMIT),
    )(x, w, b.reshape(1, N), residual, gamma.reshape(1, N), beta.reshape(1, N))


# --------------------------------------------------------------------------- #
# Embedding sum + LayerNorm (no zeros residual, type-embedding row broadcast)
# --------------------------------------------------------------------------- #
def _emb_ln_kernel(tok_ref, pos_ref, typ_ref, g_ref, b_ref, o_ref, *, eps):
    x = (tok_ref[...].astype(jnp.float32) + pos_ref[...].astype(jnp.float32)
         + typ_ref[...].astype(jnp.float32))
    mean = jnp.mean(x, axis=-1, keepdims=True)
    var = jnp.mean(jnp.square(x - mean), axis=-1, keepdims=True)
    y = (x - mean) * jax.lax.rsqrt(var + eps)
    o_ref[...] = (y * g_ref[...] + b_ref[...]).astype(o_ref.dtype)


def embed_layernorm(tok, pos, typ, gamma, beta, eps=1e-5):
    M, H = tok.shape
    tm = _pick_tile(M, (512, 256, 128, 64, 32, 16, 8))
    return pl.pallas_call(
        functools.partial(_emb_ln_kernel, eps=eps),
        out_shape=jax.ShapeDtypeStruct((M, H), jnp.float32),
        grid=(M // tm,),
        in_specs=[
            pl.BlockSpec((tm, H), lambda i: (i, 0)),
            pl.BlockSpec((tm, H), lambda i: (i, 0)),
            pl.BlockSpec((1, H), lambda i: (0, 0)),
            pl.BlockSpec((1, H), lambda i: (0, 0)),
            pl.BlockSpec((1, H), lambda i: (0, 0)),
        ],
        out_specs=pl.BlockSpec((tm, H), lambda i: (i, 0)),
        compiler_params=pltpu.CompilerParams(
            dimension_semantics=("parallel",),
            vmem_limit_bytes=VMEM_LIMIT),
    )(tok, pos, typ, gamma.reshape(1, H), beta.reshape(1, H))


# --------------------------------------------------------------------------- #
# Multi-head attention: grid over batch, heads looped in-kernel, (S, H) output
# --------------------------------------------------------------------------- #
def _attention_kernel(qkv_ref, m_ref, o_ref, *, num_heads, head_dim, scale):
    H = num_heads * head_dim
    mask = m_ref[...].astype(jnp.float32)                        # (1, S) additive key mask
    outs = []
    for h in range(num_heads):
        q = qkv_ref[:, h * head_dim:(h + 1) * head_dim].astype(jnp.bfloat16)
        k = qkv_ref[:, H + h * head_dim:H + (h + 1) * head_dim].astype(jnp.bfloat16)
        v = qkv_ref[:, 2 * H + h * head_dim:2 * H + (h + 1) * head_dim].astype(jnp.bfloat16)
        s = jax.lax.dot_general(q, k, (((1,), (1,)), ((), ())),
                                preferred_element_type=jnp.float32) * scale   # (S, S)
        s = s + mask
        s_max = jnp.max(s, axis=-1, keepdims=True)
        p = jnp.exp(s - s_max)
        p = p * pl.reciprocal(jnp.sum(p, axis=-1, keepdims=True), approx=True)
        outs.append(jnp.dot(p.astype(jnp.bfloat16), v,
                            preferred_element_type=jnp.float32))
    o_ref[...] = jnp.concatenate(outs, axis=-1).astype(o_ref.dtype)   # single lane-dense store


def attention(qkv, add_mask, num_heads, head_dim):
    """qkv: (B, S, 3H) fused Q|K|V; add_mask: (B, 1, S) additive. Returns (B, S, H)."""
    B, S, threeH = qkv.shape
    H = num_heads * head_dim
    return pl.pallas_call(
        functools.partial(_attention_kernel, num_heads=num_heads, head_dim=head_dim,
                          scale=1.0 / math.sqrt(head_dim)),
        out_shape=jax.ShapeDtypeStruct((B, S, H), jnp.float32),
        grid=(B,),
        in_specs=[
            pl.BlockSpec((None, S, threeH), lambda b: (b, 0, 0)),
            pl.BlockSpec((None, 1, S), lambda b: (b, 0, 0)),
        ],
        out_specs=pl.BlockSpec((None, S, H), lambda b: (b, 0, 0)),
        compiler_params=pltpu.CompilerParams(
            dimension_semantics=("parallel",),
            vmem_limit_bytes=VMEM_LIMIT),
    )(qkv, add_mask)


# --------------------------------------------------------------------------- #
# Pooler(tanh) + numeric-feature concat + regression head, fused (tiny)
# --------------------------------------------------------------------------- #
def _pooler_head_kernel(cls_ref, num_ref, pw_ref, pb_ref, hwt_ref, hwn_ref, hb_ref, o_ref):
    pooled = jnp.tanh(jnp.dot(cls_ref[...], pw_ref[...],
                              preferred_element_type=jnp.float32) + pb_ref[...])
    logits = (jnp.dot(pooled, hwt_ref[...], preferred_element_type=jnp.float32)
              + jnp.dot(num_ref[...], hwn_ref[...], preferred_element_type=jnp.float32)
              + hb_ref[...])
    o_ref[...] = logits.astype(o_ref.dtype)


def pooler_head(cls, numeric, pool_w, pool_b, head_w, head_b):
    B, H = cls.shape
    L = head_w.shape[1]
    head_w_t = head_w[:H]          # (H, L): acts on pooled text features
    head_w_n = head_w[H:]          # (num_numeric, L): acts on the concatenated numerics
    return pl.pallas_call(
        _pooler_head_kernel,
        out_shape=jax.ShapeDtypeStruct((B, L), jnp.float32),
    )(cls, numeric, pool_w, pool_b.reshape(1, H), head_w_t, head_w_n, head_b.reshape(1, L))


# --------------------------------------------------------------------------- #
# Parameter init (deterministic, synthetic "Roberta" config)
# --------------------------------------------------------------------------- #
def init_params(key, cfg):
    H, I = cfg["hidden"], cfg["intermediate"]

    def nxt():
        nonlocal key
        key, sub = jax.random.split(key)
        return sub

    def nrm(shape, dtype=jnp.float32):
        return (0.02 * jax.random.normal(nxt(), shape, jnp.float32)).astype(dtype)

    zeros = lambda shape: jnp.zeros(shape, jnp.float32)
    ones = lambda shape: jnp.ones(shape, jnp.float32)

    word_emb = nrm((cfg["vocab"], H)).at[cfg["pad_idx"]].set(0.0)
    params = {
        "word_emb": word_emb,
        "pos_emb": nrm((cfg["max_pos"], H)),
        "type_emb": nrm((cfg["type_vocab"], H)),
        "emb_ln_g": ones((H,)), "emb_ln_b": zeros((H,)),
        "layers": [],
        "pool_w": nrm((H, H)), "pool_b": zeros((H,)),
        "head_w": nrm((H + cfg["num_numeric"], cfg["num_labels"])),
        "head_b": zeros((cfg["num_labels"],)),
    }
    wdt = jnp.bfloat16  # encoder matmul weights stream as bf16; accumulation stays f32
    for _ in range(cfg["layers"]):
        params["layers"].append({
            "qkv_w": nrm((H, 3 * H), wdt), "qkv_b": zeros((3 * H,)),   # fused Q|K|V
            "o_w": nrm((H, H), wdt), "o_b": zeros((H,)),
            "ln1_g": ones((H,)), "ln1_b": zeros((H,)),
            "i_w": nrm((H, I), wdt), "i_b": zeros((I,)),
            "f_w": nrm((I, H), wdt), "f_b": zeros((H,)),
            "ln2_g": ones((H,)), "ln2_b": zeros((H,)),
        })
    return params


# --------------------------------------------------------------------------- #
# Forward pass (mirrors CustomSequenceClassification.forward, eval mode)
# --------------------------------------------------------------------------- #
def roberta_classifier_forward(params, input_ids, attention_mask,
                               travel_month, travel_duration, land, cfg):
    B, S = input_ids.shape
    H, nh = cfg["hidden"], cfg["heads"]
    hd = H // nh
    M = B * S

    # --- embeddings (gathers in XLA glue, sum + LayerNorm fused in Pallas) ---
    mask_ids = (input_ids != cfg["pad_idx"]).astype(jnp.int32)
    position_ids = jnp.cumsum(mask_ids, axis=1) * mask_ids + cfg["pad_idx"]
    tok = params["word_emb"][input_ids].reshape(M, H)
    pos = params["pos_emb"][position_ids].reshape(M, H)
    typ = params["type_emb"][0:1]                               # token_type_ids are all zero
    h = embed_layernorm(tok, pos, typ, params["emb_ln_g"], params["emb_ln_b"])
    # embedding dropout: eval-mode identity

    add_mask = ((1.0 - attention_mask.astype(jnp.float32)) * -1e9).reshape(B, 1, S)

    # --- encoder layers ---
    for layer in params["layers"]:
        qkv = linear(h, layer["qkv_w"], layer["qkv_b"])                       # (M, 3H)
        ctx = attention(qkv.reshape(B, S, 3 * H), add_mask, nh, hd)           # (B, S, H)
        h = linear_add_layernorm(ctx.reshape(M, H), layer["o_w"], layer["o_b"],
                                 h, layer["ln1_g"], layer["ln1_b"])           # o-proj + add + LN1
        inter = linear(h, layer["i_w"], layer["i_b"], activation="gelu")      # (M, I)
        h = linear_add_layernorm(inter, layer["f_w"], layer["f_b"],
                                 h, layer["ln2_g"], layer["ln2_b"])           # FFN-down + add + LN2

    # --- pooler([CLS], tanh) + numeric concat + regression head (fused, eval dropout) ---
    cls = h.reshape(B, S, H)[:, 0, :]                                          # (B, H)
    numeric = jnp.concatenate(
        [travel_month, travel_duration, land], axis=1).astype(jnp.float32)     # (B, 3)
    logits = pooler_head(cls, numeric, params["pool_w"], params["pool_b"],
                         params["head_w"], params["head_b"])                   # (B, num_labels)
    return logits


# --------------------------------------------------------------------------- #
if __name__ == "__main__":
    cfg = dict(vocab=100, hidden=32, layers=2, heads=2, intermediate=64,
               max_pos=40, type_vocab=1, pad_idx=1, num_numeric=3, num_labels=1)

    key = jax.random.PRNGKey(0)
    pkey, dkey = jax.random.split(key)
    params = init_params(pkey, cfg)

    B, S = 2, 8
    k1, k2, k3, k4 = jax.random.split(dkey, 4)
    input_ids = jax.random.randint(k1, (B, S), 3, cfg["vocab"], dtype=jnp.int32)
    attention_mask = jnp.ones((B, S), jnp.float32)
    travel_month = jax.random.randint(k2, (B, 1), 1, 13).astype(jnp.float32)
    travel_duration = jax.random.uniform(k3, (B, 1), jnp.float32, 1.0, 30.0)
    land = jax.random.randint(k4, (B, 1), 0, 5).astype(jnp.float32)

    logits = roberta_classifier_forward(params, input_ids, attention_mask,
                                        travel_month, travel_duration, land, cfg)
    jax.block_until_ready(logits)
    assert logits.shape == (B, cfg["num_labels"]) and logits.dtype == jnp.float32
    print("KERNEL_OK")
</pallas_src>

<mosaic_0001>
module attributes {stable_mosaic.version = 11 : i64} {
  func.func @_emb_ln_kernel(%arg0: i32, %arg1: memref<16x32xf32, #tpu.memory_space<vmem>>, %arg2: memref<16x32xf32, #tpu.memory_space<vmem>>, %arg3: memref<1x32xf32, #tpu.memory_space<vmem>>, %arg4: memref<1x32xf32, #tpu.memory_space<vmem>>, %arg5: memref<1x32xf32, #tpu.memory_space<vmem>>, %arg6: memref<16x32xf32, #tpu.memory_space<vmem>>) attributes {dimension_semantics = [#tpu.dimension_semantics<parallel>], iteration_bounds = array<i64: 1>, scalar_prefetch = 0 : i64, scratch_operands = 0 : i64, tpu.core_type = #tpu.core_type<tc>, window_params = [{transform_indices = @transform_0, window_bounds = array<i64: 16, 32>}, {transform_indices = @transform_1, window_bounds = array<i64: 16, 32>}, {pipeline_mode = #tpu.pipeline_mode<synchronous>, transform_indices = @transform_2, window_bounds = array<i64: 1, 32>}, {pipeline_mode = #tpu.pipeline_mode<synchronous>, transform_indices = @transform_3, window_bounds = array<i64: 1, 32>}, {pipeline_mode = #tpu.pipeline_mode<synchronous>, transform_indices = @transform_4, window_bounds = array<i64: 1, 32>}, {transform_indices = @transform_5, window_bounds = array<i64: 16, 32>}]} {
    %c0 = arith.constant 0 : index
    %c0_0 = arith.constant 0 : index
    %0 = vector.load %arg1[%c0, %c0_0] : memref<16x32xf32, #tpu.memory_space<vmem>>, vector<16x32xf32>
    %c0_1 = arith.constant 0 : index
    %c0_2 = arith.constant 0 : index
    %1 = vector.load %arg2[%c0_1, %c0_2] : memref<16x32xf32, #tpu.memory_space<vmem>>, vector<16x32xf32>
    %2 = arith.addf %0, %1 : vector<16x32xf32>
    %c0_3 = arith.constant 0 : index
    %c0_4 = arith.constant 0 : index
    %3 = vector.load %arg3[%c0_3, %c0_4] : memref<1x32xf32, #tpu.memory_space<vmem>>, vector<1x32xf32>
    %4 = vector.broadcast %3 : vector<1x32xf32> to vector<16x32xf32>
    %5 = arith.addf %2, %4 : vector<16x32xf32>
    %cst = arith.constant dense<0.000000e+00> : vector<16xf32>
    %6 = vector.multi_reduction <add>, %5, %cst [1] : vector<16x32xf32> to vector<16xf32>
    %7 = vector.shape_cast %6 : vector<16xf32> to vector<16x1xf32>
    %cst_5 = arith.constant 3.200000e+01 : f32
    %8 = vector.broadcast %cst_5 : f32 to vector<16x1xf32>
    %9 = arith.divf %7, %8 : vector<16x1xf32>
    %10 = vector.broadcast %9 : vector<16x1xf32> to vector<16x32xf32>
    %11 = arith.subf %5, %10 : vector<16x32xf32>
    %12 = arith.mulf %11, %11 : vector<16x32xf32>
    %cst_6 = arith.constant dense<0.000000e+00> : vector<16xf32>
    %13 = vector.multi_reduction <add>, %12, %cst_6 [1] : vector<16x32xf32> to vector<16xf32>
    %14 = vector.shape_cast %13 : vector<16xf32> to vector<16x1xf32>
    %cst_7 = arith.constant 3.200000e+01 : f32
    %15 = vector.broadcast %cst_7 : f32 to vector<16x1xf32>
    %16 = arith.divf %14, %15 : vector<16x1xf32>
    %17 = vector.broadcast %9 : vector<16x1xf32> to vector<16x32xf32>
    %18 = arith.subf %5, %17 : vector<16x32xf32>
    %cst_8 = arith.constant 9.99999974E-6 : f32
    %19 = vector.broadcast %cst_8 : f32 to vector<16x1xf32>
    %20 = arith.addf %16, %19 : vector<16x1xf32>
    %21 = math.rsqrt %20 : vector<16x1xf32>
    %22 = vector.broadcast %21 : vector<16x1xf32> to vector<16x32xf32>
    %23 = arith.mulf %18, %22 : vector<16x32xf32>
    %c0_9 = arith.constant 0 : index
    %c0_10 = arith.constant 0 : index
    %24 = vector.load %arg4[%c0_9, %c0_10] : memref<1x32xf32, #tpu.memory_space<vmem>>, vector<1x32xf32>
    %25 = vector.broadcast %24 : vector<1x32xf32> to vector<16x32xf32>
    %26 = arith.mulf %23, %25 : vector<16x32xf32>
    %c0_11 = arith.constant 0 : index
    %c0_12 = arith.constant 0 : index
    %27 = vector.load %arg5[%c0_11, %c0_12] : memref<1x32xf32, #tpu.memory_space<vmem>>, vector<1x32xf32>
    %28 = vector.broadcast %27 : vector<1x32xf32> to vector<16x32xf32>
    %29 = arith.addf %26, %28 : vector<16x32xf32>
    %c0_13 = arith.constant 0 : index
    %c0_14 = arith.constant 0 : index
    %30 = vector.load %arg6[%c0_13, %c0_14] : memref<16x32xf32, #tpu.memory_space<vmem>>, vector<16x32xf32>
    tpu.vector_store %arg6[%c0_13, %c0_14], %29 {strides = array<i32>} : memref<16x32xf32, #tpu.memory_space<vmem>>, vector<16x32xf32>,
    return
  }
  func.func @transform_0(%arg0: i32) -> (i32, i32) {
    %c0_i32 = arith.constant 0 : i32
    %c0_i32_0 = arith.constant 0 : i32
    return %arg0, %c0_i32 : i32, i32
  }
  func.func @transform_1(%arg0: i32) -> (i32, i32) {
    %c0_i32 = arith.constant 0 : i32
    %c0_i32_0 = arith.constant 0 : i32
    return %arg0, %c0_i32 : i32, i32
  }
  func.func @transform_2(%arg0: i32) -> (i32, i32) {
    %c0_i32 = arith.constant 0 : i32
    %c0_i32_0 = arith.constant 0 : i32
    %c0_i32_1 = arith.constant 0 : i32
    return %c0_i32, %c0_i32_0 : i32, i32
  }
  func.func @transform_3(%arg0: i32) -> (i32, i32) {
    %c0_i32 = arith.constant 0 : i32
    %c0_i32_0 = arith.constant 0 : i32
    %c0_i32_1 = arith.constant 0 : i32
    return %c0_i32, %c0_i32_0 : i32, i32
  }
  func.func @transform_4(%arg0: i32) -> (i32, i32) {
    %c0_i32 = arith.constant 0 : i32
    %c0_i32_0 = arith.constant 0 : i32
    %c0_i32_1 = arith.constant 0 : i32
    return %c0_i32, %c0_i32_0 : i32, i32
  }
  func.func @transform_5(%arg0: i32) -> (i32, i32) {
    %c0_i32 = arith.constant 0 : i32
    %c0_i32_0 = arith.constant 0 : i32
    return %arg0, %c0_i32 : i32, i32
  }
}

</mosaic_0001>

<llo_original>
// kernel: tpu_custom_call.1
$region0: #{tpu_custom_call.1}
  #allocation0 [shape = 'u32[]', space=smem, size = 0x4, offset = 0x4, fixed_abs, tag = 'smem constant byte address 0x4 - core index']
  #allocation1 [shape = 'u32[144,128]{1,0:T(1,128)}', space=vmem, size = 0x12000, scoped, tag = 'internal scratch']
  %s0 = inlined_call_operand.hbm [shape: f32[16,32], index: 0, kind: input, shape index: {}]
  %s1 = inlined_call_operand.hbm [shape: f32[16,32], index: 1, kind: input, shape index: {}]
  %s2 = inlined_call_operand.vmem [shape: f32[1,32], index: 2, kind: input, shape index: {}]
  %s3 = inlined_call_operand.vmem [shape: f32[1,32], index: 3, kind: input, shape index: {}]
  %s4 = inlined_call_operand.vmem [shape: f32[1,32], index: 4, kind: input, shape index: {}]
  %s5 = inlined_call_operand.hbm [shape: f32[16,32], index: 5, kind: output, shape index: {}]
  %s6 = sld [smem:[#allocation0]]
  $region38: #{tpu_custom_call.1} parent=0
    _
  %s8 = ssub.s32 1, %s6
  %s9 = scalar_select 0, %s8, %s6
  $region1: #{tpu_custom_call.1} parent=0
    #allocation2 [shape = 'u8[8192]{0}', space=vmem, size = 0x2000, scoped, tag = 'input window, operand 0, single buffered']
    #allocation3 [shape = 's32[1]{0}', space=sflag, size = 0x4, scoped, tag = 'scoped memory for tpu_custom_call.1']
    #allocation4 [shape = 's32[1]{0}', space=sflag, size = 0x4, scoped, tag = 'scoped memory for tpu_custom_call.1']
    #allocation5 [shape = 'u8[8192]{0}', space=vmem, size = 0x2000, scoped, tag = 'input window, operand 1, single buffered']
    #allocation6 [shape = 's32[1]{0}', space=sflag, size = 0x4, scoped, tag = 'scoped memory for tpu_custom_call.1']
    #allocation7 [shape = 'u8[8192]{0}', space=vmem, size = 0x2000, scoped, tag = 'output window, operand 0, single buffered']
    %10 = vsyncpa [#allocation3], 0
    %11 = vsyncpa [#allocation6], 0
    %12 = vsyncpa [#allocation4], 0
    // Predicated region
    $region2: #{tpu_custom_call.1} parent=1 // pred_check
      _
    $region3: #{tpu_custom_call.1} parent=1 // pred_check_branch
      %14 = sbr.rel (0) target = $region5
    $region4: #{tpu_custom_call.1} parent=1 // pred_region
      %s16 = ssub.s32 256, 256
      %17 = vsyncadd [#allocation3], %s16
      %s18 = sshll.u32 [#allocation2], 4
      %s19 = int_to_ptr.vmem [resolvable:$true] %s18
      %24 = dma.hbm_to_vmem [thread:$0]  %s0, 256, %s19, [#allocation3], 128, 128, 8
    $region5: #{tpu_custom_call.1} parent=1 // pred_fallthru
      _
    // Predicated region
    $region6: #{tpu_custom_call.1} parent=1 // pred_check
      _
    $region7: #{tpu_custom_call.1} parent=1 // pred_check_branch
      %26 = sbr.rel (0) target = $region9
    $region8: #{tpu_custom_call.1} parent=1 // pred_region
      %s28 = ssub.s32 256, 256
      %29 = vsyncadd [#allocation6], %s28
      %s30 = sshll.u32 [#allocation5], 4
      %s31 = int_to_ptr.vmem [resolvable:$true] %s30
      %36 = dma.hbm_to_vmem [thread:$0]  %s1, 256, %s31, [#allocation6], 128, 128, 8
    $region9: #{tpu_custom_call.1} parent=1 // pred_fallthru
      _
    // Predicated region
    $region10: #{tpu_custom_call.1} parent=1 // pred_check
      _
    $region11: #{tpu_custom_call.1} parent=1 // pred_check_branch
      %38 = sbr.rel (0) target = $region13
    $region12: #{tpu_custom_call.1} parent=1 // pred_region
      _
    $region13: #{tpu_custom_call.1} parent=1 // pred_fallthru
      _
    // Predicated region
    $region14: #{tpu_custom_call.1} parent=1 // pred_check
      _
    $region15: #{tpu_custom_call.1} parent=1 // pred_check_branch
      %40 = sbr.rel (0) target = $region17
    $region16: #{tpu_custom_call.1} parent=1 // pred_region
      _
    $region17: #{tpu_custom_call.1} parent=1 // pred_fallthru
      _
    // Predicated region
    $region18: #{tpu_custom_call.1} parent=1 // pred_check
      _
    $region19: #{tpu_custom_call.1} parent=1 // pred_check_branch
      %42 = sbr.rel (0) target = $region21
    $region20: #{tpu_custom_call.1} parent=1 // pred_region
      _
    $region21: #{tpu_custom_call.1} parent=1 // pred_fallthru
      _
    // Predicated region
    $region22: #{tpu_custom_call.1} parent=1 // pred_check
      _
    $region23: #{tpu_custom_call.1} parent=1 // pred_check_branch
      %44 = sbr.rel (0) target = $region25
    $region24: #{tpu_custom_call.1} parent=1 // pred_region
      %45 = dma.done [#allocation3], 256
    $region25: #{tpu_custom_call.1} parent=1 // pred_fallthru
      _
    // Predicated region
    $region26: #{tpu_custom_call.1} parent=1 // pred_check
      _
    $region27: #{tpu_custom_call.1} parent=1 // pred_check_branch
      %47 = sbr.rel (0) target = $region29
    $region28: #{tpu_custom_call.1} parent=1 // pred_region
      %48 = dma.done [#allocation6], 256
    $region29: #{tpu_custom_call.1} parent=1 // pred_fallthru
      _
    %v49 = vld [vmem:[#allocation2] sm:$0xff]
    %v50 = vld [vmem:[#allocation2 + $0x8] sm:$0xff]
    %v51 = vld [vmem:[#allocation5] sm:$0xff]
    %v52 = vld [vmem:[#allocation5 + $0x8] sm:$0xff]
    %v53 = vadd.f32 %v49, %v51
    %v54 = vadd.f32 %v50, %v52
    %v55 = vld [vmem:[%s2] sm:$0x1]
    %v57 = vlaneseq
    %v58 = vshrl.u32 %v57, 7
    %v59 = vsub.s32 0, %v58
    %v60 = vrot.slane %v55, %v59
    %v62 = vadd.f32 %v53, %v60
    %v63 = vadd.f32 %v54, %v60
    %vm64 = vcmask 261120
    %v65 = vsel %vm64, %v62, 0.0
    %66 = vadd.xlane.f32.xlu0 %v65
    %v67 = vpop.xlane.xlu0 %66
    %v68 = vsel %vm64, %v63, 0.0
    %69 = vadd.xlane.f32.xlu0 %v68
    %v70 = vpop.xlane.xlu0 %69
    %v71 = vrcp.pop 32.0
    %v72 = vmul.f32 %v67, %v71
    %v73 = vmul.f32 %v70, %v71
    %v74 = vsub.f32 %v62, %v72
    %v75 = vsub.f32 %v63, %v73
    %v76 = vmul.f32 %v74, %v74
    %v77 = vmul.f32 %v75, %v75
    %v78 = vsel %vm64, %v76, 0.0
    %79 = vadd.xlane.f32.xlu0 %v78
    %v80 = vpop.xlane.xlu0 %79
    %v81 = vsel %vm64, %v77, 0.0
    %82 = vadd.xlane.f32.xlu0 %v81
    %v83 = vpop.xlane.xlu0 %82
    %v84 = vmul.f32 %v80, %v71
    %v85 = vmul.f32 %v83, %v71
    %v86 = vadd.f32 %v84, 1e-05
    %v87 = vadd.f32 %v85, 1e-05
    %v88 = vrsqrt.pop %v86
    %v89 = vrsqrt.pop %v87
    %v90 = vmul.f32 %v74, %v88
    %v91 = vmul.f32 %v75, %v89
    %v92 = vld [vmem:[%s3] sm:$0x1]
    %v94 = vlaneseq
    %v95 = vshrl.u32 %v94, 7
    %v96 = vsub.s32 0, %v95
    %v97 = vrot.slane %v92, %v96
    %v99 = vmul.f32 %v90, %v97
    %v100 = vmul.f32 %v91, %v97
    %v101 = vld [vmem:[%s4] sm:$0x1]
    %v103 = vlaneseq
    %v104 = vshrl.u32 %v103, 7
    %v105 = vsub.s32 0, %v104
    %v106 = vrot.slane %v101, %v105
    %v108 = vadd.f32 %v99, %v106
    %v109 = vadd.f32 %v100, %v106
    %110 = vst.msk [vmem:[#allocation7] sm:$0xff] %vm64, %v108
    %111 = vst.msk [vmem:[#allocation7 + $0x8] sm:$0xff] %vm64, %v109
    // Predicated region
    $region30: #{tpu_custom_call.1} parent=1 // pred_check
      _
    $region31: #{tpu_custom_call.1} parent=1 // pred_check_branch
      %113 = sbr.rel (0) target = $region33
    $region32: #{tpu_custom_call.1} parent=1 // pred_region
      %s115 = ssub.s32 256, 256
      %116 = vsyncadd [#allocation4], %s115
      %s117 = sshll.u32 [#allocation7], 4
      %s118 = int_to_ptr.vmem [resolvable:$true] %s117
      %123 = dma.vmem_to_hbm [thread:$0]  %s118, 256, %s5, [#allocation4], 128, 128, 8
    $region33: #{tpu_custom_call.1} parent=1 // pred_fallthru
      _
    // Predicated region
    $region34: #{tpu_custom_call.1} parent=1 // pred_check
      _
    $region35: #{tpu_custom_call.1} parent=1 // pred_check_branch
      %125 = sbr.rel (0) target = $region37
    $region36: #{tpu_custom_call.1} parent=1 // pred_region
      %126 = dma.done [#allocation4], 256
    $region37: #{tpu_custom_call.1} parent=1 // pred_fallthru
      _
    %127 = vsyncpa [#allocation3], 1
    %128 = vsyncpa [#allocation6], 1
    %129 = vsyncpa [#allocation4], 1

</llo_original>
